<compile_context>
chip_gen: v6e
topology: v6e:2x2x1
jax: 0.10.0
libtpu: 0.0.40
codegen_flags: <defaults>
</compile_context>

<pallas_src>
import math

import jax
import jax.numpy as jnp
from jax.experimental import pallas as pl
from jax.experimental.pallas import tpu as pltpu

LANE = 128     # lane width / MXU-friendly feature padding granularity
SUBLANE = 8    # sublane granularity for the batch (second-to-last) axis


def _round_up(n, m):
    return ((n + m - 1) // m) * m


def simplenet_kernel(x_ref, w1_ref, b1_ref, w2_ref, b2_ref, w3_ref, b3_ref, o_ref):
    # Leading ReLU on the raw input (first layer of the nn.Sequential).
    # Elementwise max in f32 (v5e-safe), then feed the MXU in bf16.
    h = jnp.maximum(x_ref[...].astype(jnp.float32), 0.0).astype(jnp.bfloat16)

    # Hidden layer 1: Linear + (Dropout == identity at inference) + ReLU
    h = jnp.dot(h, w1_ref[...], preferred_element_type=jnp.float32) + b1_ref[...]
    h = jnp.maximum(h, 0.0).astype(jnp.bfloat16)

    # Hidden layer 2: Linear + (Dropout == identity at inference) + ReLU
    h = jnp.dot(h, w2_ref[...], preferred_element_type=jnp.float32) + b2_ref[...]
    h = jnp.maximum(h, 0.0).astype(jnp.bfloat16)

    # Output head: Linear, then round(sigmoid(z)) == (z > 0)  (EUP-free epilogue).
    logits = jnp.dot(h, w3_ref[...], preferred_element_type=jnp.float32) + b3_ref[...]
    o_ref[...] = (logits > 0.0).astype(jnp.float32)


def simplenet_forward(x, padded_params, num_classes, *, batch_tile=128):
    """Run the Pallas SimpleNet forward.  `padded_params` come from pad_params()."""
    w1, b1, w2, b2, w3, b3 = padded_params
    batch, in_dim = x.shape
    in_pad, h1_pad = w1.shape
    _, h2_pad = w2.shape
    _, out_pad = w3.shape

    # Adapt the batch tile: never larger than the (sublane-rounded) batch, always
    # a multiple of 8 sublanes.  Small batches then avoid padded-tile waste.
    batch_tile = max(SUBLANE, min(_round_up(batch_tile, SUBLANE),
                                  _round_up(batch, SUBLANE)))
    batch_pad = _round_up(batch, batch_tile)

    x_p = (
        jnp.zeros((batch_pad, in_pad), jnp.bfloat16)
        .at[:batch, :in_dim]
        .set(x.astype(jnp.bfloat16))
    )

    grid = (batch_pad // batch_tile,)
    const2 = lambda i: (0, 0)  # weights/biases stay VMEM-resident across the grid

    out = pl.pallas_call(
        simplenet_kernel,
        out_shape=jax.ShapeDtypeStruct((batch_pad, out_pad), jnp.float32),
        grid=grid,
        in_specs=[
            pl.BlockSpec((batch_tile, in_pad), lambda i: (i, 0)),
            pl.BlockSpec((in_pad, h1_pad), const2),
            pl.BlockSpec((1, h1_pad), const2),
            pl.BlockSpec((h1_pad, h2_pad), const2),
            pl.BlockSpec((1, h2_pad), const2),
            pl.BlockSpec((h2_pad, out_pad), const2),
            pl.BlockSpec((1, out_pad), const2),
        ],
        out_specs=pl.BlockSpec((batch_tile, out_pad), lambda i: (i, 0)),
        compiler_params=pltpu.CompilerParams(
            # Batch tiles are independent -> shard across TensorCores (v7x/megacore).
            dimension_semantics=("parallel",),
            # Headroom if batch_tile is grown well past 128 (weights here are tiny).
            vmem_limit_bytes=64 * 1024 * 1024,
        ),
    )(x_p, w1, b1, w2, b2, w3, b3)

    # Strip batch / class padding.
    return out[:batch, :num_classes]


def init_params(key, input_dim, hidden_sizes, num_classes):
    """PyTorch-Linear-style init U(-1/sqrt(fan_in), 1/sqrt(fan_in)) at the *logical* sizes.

    Weights are (in_features, out_features); biases are (1, out_features) f32."""
    dims = [input_dim] + list(hidden_sizes) + [num_classes]
    params = []
    for i in range(len(dims) - 1):
        fan_in, fan_out = dims[i], dims[i + 1]
        key, kw, kb = jax.random.split(key, 3)
        bound = 1.0 / math.sqrt(fan_in)
        w = jax.random.uniform(kw, (fan_in, fan_out), jnp.float32, -bound, bound)
        b = jax.random.uniform(kb, (1, fan_out), jnp.float32, -bound, bound)
        params.extend([w, b])
    return tuple(params)


def pad_params(params):
    """Zero-pad every feature dim to a multiple of 128 lanes; weights -> bf16, biases stay f32."""
    out = []
    for i in range(0, len(params), 2):
        w, b = params[i], params[i + 1]
        fi, fo = w.shape
        fi_p, fo_p = _round_up(fi, LANE), _round_up(fo, LANE)
        w_p = (
            jnp.zeros((fi_p, fo_p), jnp.bfloat16)
            .at[:fi, :fo]
            .set(w.astype(jnp.bfloat16))
        )
        b_p = jnp.zeros((1, fo_p), jnp.float32).at[:, :fo].set(b)
        out.extend([w_p, b_p])
    return tuple(out)


def reference_forward(x, padded_params, num_classes):
    """Plain-JAX reference of the same forward pass (same bf16/f32 math path,
    but with the original sigmoid + round epilogue to validate the sign-test rewrite)."""
    w1, b1, w2, b2, w3, b3 = padded_params
    batch, in_dim = x.shape
    in_pad = w1.shape[0]
    x_p = (
        jnp.zeros((batch, in_pad), jnp.bfloat16)
        .at[:, :in_dim]
        .set(x.astype(jnp.bfloat16))
    )
    h = jnp.maximum(x_p.astype(jnp.float32), 0.0).astype(jnp.bfloat16)
    h = jnp.dot(h, w1, preferred_element_type=jnp.float32) + b1
    h = jnp.maximum(h, 0.0).astype(jnp.bfloat16)
    h = jnp.dot(h, w2, preferred_element_type=jnp.float32) + b2
    h = jnp.maximum(h, 0.0).astype(jnp.bfloat16)
    logits = jnp.dot(h, w3, preferred_element_type=jnp.float32) + b3
    return jnp.round(jax.nn.sigmoid(logits))[:, :num_classes]


if __name__ == "__main__":
    batch = 8
    input_dim = 32
    hidden_sizes = [64, 32]
    num_classes = 4

    key = jax.random.PRNGKey(0)
    key, kx = jax.random.split(key)
    x = jax.random.normal(kx, (batch, input_dim), jnp.float32)

    params = init_params(key, input_dim, hidden_sizes, num_classes)
    padded_params = pad_params(params)

    out = simplenet_forward(x, padded_params, num_classes, batch_tile=128)
    out = jax.block_until_ready(out)

    ref = reference_forward(x, padded_params, num_classes)
    assert out.shape == (batch, num_classes)
    assert jnp.allclose(out, ref), "Pallas output mismatch vs. JAX reference"

    print("KERNEL_OK")
</pallas_src>

<mosaic_0001>
module attributes {stable_mosaic.version = 11 : i64} {
  func.func @simplenet_kernel(%arg0: i32, %arg1: memref<8x128xbf16, #tpu.memory_space<vmem>>, %arg2: memref<128x128xbf16, #tpu.memory_space<vmem>>, %arg3: memref<1x128xf32, #tpu.memory_space<vmem>>, %arg4: memref<128x128xbf16, #tpu.memory_space<vmem>>, %arg5: memref<1x128xf32, #tpu.memory_space<vmem>>, %arg6: memref<128x128xbf16, #tpu.memory_space<vmem>>, %arg7: memref<1x128xf32, #tpu.memory_space<vmem>>, %arg8: memref<8x128xf32, #tpu.memory_space<vmem>>) attributes {dimension_semantics = [#tpu.dimension_semantics<parallel>], iteration_bounds = array<i64: 1>, scalar_prefetch = 0 : i64, scratch_operands = 0 : i64, tpu.core_type = #tpu.core_type<tc>, window_params = [{transform_indices = @transform_0, window_bounds = array<i64: 8, 128>}, {pipeline_mode = #tpu.pipeline_mode<synchronous>, transform_indices = @transform_1, window_bounds = array<i64: 128, 128>}, {pipeline_mode = #tpu.pipeline_mode<synchronous>, transform_indices = @transform_2, window_bounds = array<i64: 1, 128>}, {pipeline_mode = #tpu.pipeline_mode<synchronous>, transform_indices = @transform_3, window_bounds = array<i64: 128, 128>}, {pipeline_mode = #tpu.pipeline_mode<synchronous>, transform_indices = @transform_4, window_bounds = array<i64: 1, 128>}, {pipeline_mode = #tpu.pipeline_mode<synchronous>, transform_indices = @transform_5, window_bounds = array<i64: 128, 128>}, {pipeline_mode = #tpu.pipeline_mode<synchronous>, transform_indices = @transform_6, window_bounds = array<i64: 1, 128>}, {transform_indices = @transform_7, window_bounds = array<i64: 8, 128>}]} {
    %c0 = arith.constant 0 : index
    %c0_0 = arith.constant 0 : index
    %0 = vector.load %arg1[%c0, %c0_0] : memref<8x128xbf16, #tpu.memory_space<vmem>>, vector<8x128xbf16>
    %1 = arith.extf %0 : vector<8x128xbf16> to vector<8x128xf32>
    %cst = arith.constant 0.000000e+00 : f32
    %2 = vector.broadcast %cst : f32 to vector<8x128xf32>
    %3 = arith.maximumf %1, %2 : vector<8x128xf32>
    %4 = arith.truncf %3 : vector<8x128xf32> to vector<8x128xbf16>
    %c0_1 = arith.constant 0 : index
    %c0_2 = arith.constant 0 : index
    %5 = vector.load %arg2[%c0_1, %c0_2] : memref<128x128xbf16, #tpu.memory_space<vmem>>, vector<128x128xbf16>
    %cst_3 = arith.constant dense<0.000000e+00> : vector<8x128xf32>
    %6 = tpu.matmul %4, %5, %cst_3 {dimension_numbers = #tpu.dot_dimension_numbers<[1], [0], [0], [1], [0, 0, 1, 1], [], []>} : vector<8x128xbf16>, vector<128x128xbf16>, vector<8x128xf32> -> vector<8x128xf32>
    %c0_4 = arith.constant 0 : index
    %c0_5 = arith.constant 0 : index
    %7 = vector.load %arg3[%c0_4, %c0_5] : memref<1x128xf32, #tpu.memory_space<vmem>>, vector<1x128xf32>
    %8 = vector.broadcast %7 : vector<1x128xf32> to vector<8x128xf32>
    %9 = arith.addf %6, %8 : vector<8x128xf32>
    %cst_6 = arith.constant 0.000000e+00 : f32
    %10 = vector.broadcast %cst_6 : f32 to vector<8x128xf32>
    %11 = arith.maximumf %9, %10 : vector<8x128xf32>
    %12 = arith.truncf %11 : vector<8x128xf32> to vector<8x128xbf16>
    %c0_7 = arith.constant 0 : index
    %c0_8 = arith.constant 0 : index
    %13 = vector.load %arg4[%c0_7, %c0_8] : memref<128x128xbf16, #tpu.memory_space<vmem>>, vector<128x128xbf16>
    %cst_9 = arith.constant dense<0.000000e+00> : vector<8x128xf32>
    %14 = tpu.matmul %12, %13, %cst_9 {dimension_numbers = #tpu.dot_dimension_numbers<[1], [0], [0], [1], [0, 0, 1, 1], [], []>} : vector<8x128xbf16>, vector<128x128xbf16>, vector<8x128xf32> -> vector<8x128xf32>
    %c0_10 = arith.constant 0 : index
    %c0_11 = arith.constant 0 : index
    %15 = vector.load %arg5[%c0_10, %c0_11] : memref<1x128xf32, #tpu.memory_space<vmem>>, vector<1x128xf32>
    %16 = vector.broadcast %15 : vector<1x128xf32> to vector<8x128xf32>
    %17 = arith.addf %14, %16 : vector<8x128xf32>
    %cst_12 = arith.constant 0.000000e+00 : f32
    %18 = vector.broadcast %cst_12 : f32 to vector<8x128xf32>
    %19 = arith.maximumf %17, %18 : vector<8x128xf32>
    %20 = arith.truncf %19 : vector<8x128xf32> to vector<8x128xbf16>
    %c0_13 = arith.constant 0 : index
    %c0_14 = arith.constant 0 : index
    %21 = vector.load %arg6[%c0_13, %c0_14] : memref<128x128xbf16, #tpu.memory_space<vmem>>, vector<128x128xbf16>
    %cst_15 = arith.constant dense<0.000000e+00> : vector<8x128xf32>
    %22 = tpu.matmul %20, %21, %cst_15 {dimension_numbers = #tpu.dot_dimension_numbers<[1], [0], [0], [1], [0, 0, 1, 1], [], []>} : vector<8x128xbf16>, vector<128x128xbf16>, vector<8x128xf32> -> vector<8x128xf32>
    %c0_16 = arith.constant 0 : index
    %c0_17 = arith.constant 0 : index
    %23 = vector.load %arg7[%c0_16, %c0_17] : memref<1x128xf32, #tpu.memory_space<vmem>>, vector<1x128xf32>
    %24 = vector.broadcast %23 : vector<1x128xf32> to vector<8x128xf32>
    %25 = arith.addf %22, %24 : vector<8x128xf32>
    %cst_18 = arith.constant 0.000000e+00 : f32
    %26 = vector.broadcast %cst_18 : f32 to vector<8x128xf32>
    %27 = arith.cmpf ogt, %25, %26 : vector<8x128xf32>
    %28 = arith.extui %27 : vector<8x128xi1> to vector<8x128xi32>
    %29 = arith.sitofp %28 : vector<8x128xi32> to vector<8x128xf32>
    %c0_19 = arith.constant 0 : index
    %c0_20 = arith.constant 0 : index
    %30 = vector.load %arg8[%c0_19, %c0_20] : memref<8x128xf32, #tpu.memory_space<vmem>>, vector<8x128xf32>
    tpu.vector_store %arg8[%c0_19, %c0_20], %29 {strides = array<i32>} : memref<8x128xf32, #tpu.memory_space<vmem>>, vector<8x128xf32>,
    return
  }
  func.func @transform_0(%arg0: i32) -> (i32, i32) {
    %c0_i32 = arith.constant 0 : i32
    %c0_i32_0 = arith.constant 0 : i32
    return %arg0, %c0_i32 : i32, i32
  }
  func.func @transform_1(%arg0: i32) -> (i32, i32) {
    %c0_i32 = arith.constant 0 : i32
    %c0_i32_0 = arith.constant 0 : i32
    %c0_i32_1 = arith.constant 0 : i32
    return %c0_i32, %c0_i32_0 : i32, i32
  }
  func.func @transform_2(%arg0: i32) -> (i32, i32) {
    %c0_i32 = arith.constant 0 : i32
    %c0_i32_0 = arith.constant 0 : i32
    %c0_i32_1 = arith.constant 0 : i32
    return %c0_i32, %c0_i32_0 : i32, i32
  }
  func.func @transform_3(%arg0: i32) -> (i32, i32) {
    %c0_i32 = arith.constant 0 : i32
    %c0_i32_0 = arith.constant 0 : i32
    %c0_i32_1 = arith.constant 0 : i32
    return %c0_i32, %c0_i32_0 : i32, i32
  }
  func.func @transform_4(%arg0: i32) -> (i32, i32) {
    %c0_i32 = arith.constant 0 : i32
    %c0_i32_0 = arith.constant 0 : i32
    %c0_i32_1 = arith.constant 0 : i32
    return %c0_i32, %c0_i32_0 : i32, i32
  }
  func.func @transform_5(%arg0: i32) -> (i32, i32) {
    %c0_i32 = arith.constant 0 : i32
    %c0_i32_0 = arith.constant 0 : i32
    %c0_i32_1 = arith.constant 0 : i32
    return %c0_i32, %c0_i32_0 : i32, i32
  }
  func.func @transform_6(%arg0: i32) -> (i32, i32) {
    %c0_i32 = arith.constant 0 : i32
    %c0_i32_0 = arith.constant 0 : i32
    %c0_i32_1 = arith.constant 0 : i32
    return %c0_i32, %c0_i32_0 : i32, i32
  }
  func.func @transform_7(%arg0: i32) -> (i32, i32) {
    %c0_i32 = arith.constant 0 : i32
    %c0_i32_0 = arith.constant 0 : i32
    return %arg0, %c0_i32 : i32, i32
  }
}

</mosaic_0001>

<llo_original>
// kernel: tpu_custom_call.1
$region0: #{tpu_custom_call.1}
  #allocation0 [shape = 'u32[]', space=smem, size = 0x4, offset = 0x4, fixed_abs, tag = 'smem constant byte address 0x4 - core index']
  #allocation1 [shape = 'u32[144,128]{1,0:T(1,128)}', space=vmem, size = 0x12000, scoped, tag = 'internal scratch']
  %s0 = inlined_call_operand.hbm [shape: bf16[8,128], index: 0, kind: input, shape index: {}]
  %s1 = inlined_call_operand.hbm [shape: bf16[128,128], index: 1, kind: input, shape index: {}]
  %s2 = inlined_call_operand.vmem [shape: f32[1,128], index: 2, kind: input, shape index: {}]
  %s3 = inlined_call_operand.hbm [shape: bf16[128,128], index: 3, kind: input, shape index: {}]
  %s4 = inlined_call_operand.vmem [shape: f32[1,128], index: 4, kind: input, shape index: {}]
  %s5 = inlined_call_operand.hbm [shape: bf16[128,128], index: 5, kind: input, shape index: {}]
  %s6 = inlined_call_operand.vmem [shape: f32[1,128], index: 6, kind: input, shape index: {}]
  %s7 = inlined_call_operand.hbm [shape: f32[8,128], index: 7, kind: output, shape index: {}]
  %s8 = sld [smem:[#allocation0]]
  $region54: #{tpu_custom_call.1} parent=0
    _
  %s10 = ssub.s32 1, %s8
  %s11 = scalar_select 0, %s10, %s8
  $region1: #{tpu_custom_call.1} parent=0
    #allocation2 [shape = 'u8[2048]{0}', space=vmem, size = 0x800, scoped, tag = 'input window, operand 0, single buffered']
    #allocation3 [shape = 's32[1]{0}', space=sflag, size = 0x4, scoped, tag = 'scoped memory for tpu_custom_call.1']
    #allocation4 [shape = 's32[1]{0}', space=sflag, size = 0x4, scoped, tag = 'scoped memory for tpu_custom_call.1']
    #allocation5 [shape = 'u8[32768]{0}', space=vmem, size = 0x8000, scoped, tag = 'input window, operand 1, single buffered']
    #allocation6 [shape = 's32[1]{0}', space=sflag, size = 0x4, scoped, tag = 'scoped memory for tpu_custom_call.1']
    #allocation7 [shape = 'u8[32768]{0}', space=vmem, size = 0x8000, scoped, tag = 'input window, operand 3, single buffered']
    #allocation8 [shape = 'u8[32768]{0}', space=vmem, size = 0x8000, scoped, tag = 'input window, operand 5, single buffered']
    #allocation9 [shape = 's32[1]{0}', space=sflag, size = 0x4, scoped, tag = 'scoped memory for tpu_custom_call.1']
    #allocation10 [shape = 'u8[4096]{0}', space=vmem, size = 0x1000, scoped, tag = 'output window, operand 0, single buffered']
    %12 = vsyncpa [#allocation3], 0
    %13 = vsyncpa [#allocation6], 0
    %14 = vsyncpa [#allocation9], 0
    %15 = vsyncpa [#allocation4], 0
    // Predicated region
    $region2: #{tpu_custom_call.1} parent=1 // pred_check
      _
    $region3: #{tpu_custom_call.1} parent=1 // pred_check_branch
      %17 = sbr.rel (0) target = $region5
    $region4: #{tpu_custom_call.1} parent=1 // pred_region
      %s19 = ssub.s32 64, 64
      %20 = vsyncadd [#allocation3], %s19
      %s22 = sshll.u32 [#allocation2], 4
      %s23 = int_to_ptr.vmem [resolvable:$true] %s22
      %25 = dma.hbm_to_vmem [thread:$0]  %s0, 64, %s23, [#allocation3]
    $region5: #{tpu_custom_call.1} parent=1 // pred_fallthru
      _
    // Predicated region
    $region6: #{tpu_custom_call.1} parent=1 // pred_check
      _
    $region7: #{tpu_custom_call.1} parent=1 // pred_check_branch
      %27 = sbr.rel (0) target = $region9
    $region8: #{tpu_custom_call.1} parent=1 // pred_region
      %s29 = ssub.s32 1024, 1024
      %30 = vsyncadd [#allocation6], %s29
      %s31 = sshll.u32 [#allocation5], 4
      %s32 = int_to_ptr.vmem [resolvable:$true] %s31
      %37 = dma.hbm_to_vmem [thread:$0]  %s1, 1024, %s32, [#allocation6], 64, 64, 4
    $region9: #{tpu_custom_call.1} parent=1 // pred_fallthru
      _
    // Predicated region
    $region10: #{tpu_custom_call.1} parent=1 // pred_check
      _
    $region11: #{tpu_custom_call.1} parent=1 // pred_check_branch
      %39 = sbr.rel (0) target = $region13
    $region12: #{tpu_custom_call.1} parent=1 // pred_region
      _
    $region13: #{tpu_custom_call.1} parent=1 // pred_fallthru
      _
    // Predicated region
    $region14: #{tpu_custom_call.1} parent=1 // pred_check
      _
    $region15: #{tpu_custom_call.1} parent=1 // pred_check_branch
      %41 = sbr.rel (0) target = $region17
    $region16: #{tpu_custom_call.1} parent=1 // pred_region
      %s43 = ssub.s32 1024, 1024
      %44 = vsyncadd [#allocation6], %s43
      %s45 = sshll.u32 [#allocation7], 4
      %s46 = int_to_ptr.vmem [resolvable:$true] %s45
      %51 = dma.hbm_to_vmem [thread:$0]  %s3, 1024, %s46, [#allocation6], 64, 64, 4
    $region17: #{tpu_custom_call.1} parent=1 // pred_fallthru
      _
    // Predicated region
    $region18: #{tpu_custom_call.1} parent=1 // pred_check
      _
    $region19: #{tpu_custom_call.1} parent=1 // pred_check_branch
      %53 = sbr.rel (0) target = $region21
    $region20: #{tpu_custom_call.1} parent=1 // pred_region
      _
    $region21: #{tpu_custom_call.1} parent=1 // pred_fallthru
      _
    // Predicated region
    $region22: #{tpu_custom_call.1} parent=1 // pred_check
      _
    $region23: #{tpu_custom_call.1} parent=1 // pred_check_branch
      %55 = sbr.rel (0) target = $region25
    $region24: #{tpu_custom_call.1} parent=1 // pred_region
      %s57 = ssub.s32 1024, 1024
      %58 = vsyncadd [#allocation9], %s57
      %s59 = sshll.u32 [#allocation8], 4
      %s60 = int_to_ptr.vmem [resolvable:$true] %s59
      %65 = dma.hbm_to_vmem [thread:$0]  %s5, 1024, %s60, [#allocation9], 64, 64, 4
    $region25: #{tpu_custom_call.1} parent=1 // pred_fallthru
      _
    // Predicated region
    $region26: #{tpu_custom_call.1} parent=1 // pred_check
      _
    $region27: #{tpu_custom_call.1} parent=1 // pred_check_branch
      %67 = sbr.rel (0) target = $region29
    $region28: #{tpu_custom_call.1} parent=1 // pred_region
      _
    $region29: #{tpu_custom_call.1} parent=1 // pred_fallthru
      _
    // Predicated region
    $region30: #{tpu_custom_call.1} parent=1 // pred_check
      _
    $region31: #{tpu_custom_call.1} parent=1 // pred_check_branch
      %69 = sbr.rel (0) target = $region33
    $region32: #{tpu_custom_call.1} parent=1 // pred_region
      %70 = dma.done [#allocation3], 64
    $region33: #{tpu_custom_call.1} parent=1 // pred_fallthru
      _
    // Predicated region
    $region34: #{tpu_custom_call.1} parent=1 // pred_check
      _
    $region35: #{tpu_custom_call.1} parent=1 // pred_check_branch
      %72 = sbr.rel (0) target = $region37
    $region36: #{tpu_custom_call.1} parent=1 // pred_region
      %73 = dma.done [#allocation6], 1024
    $region37: #{tpu_custom_call.1} parent=1 // pred_fallthru
      _
    // Predicated region
    $region38: #{tpu_custom_call.1} parent=1 // pred_check
      _
    $region39: #{tpu_custom_call.1} parent=1 // pred_check_branch
      %75 = sbr.rel (0) target = $region41
    $region40: #{tpu_custom_call.1} parent=1 // pred_region
      %76 = dma.done [#allocation6], 1024
    $region41: #{tpu_custom_call.1} parent=1 // pred_fallthru
      _
    // Predicated region
    $region42: #{tpu_custom_call.1} parent=1 // pred_check
      _
    $region43: #{tpu_custom_call.1} parent=1 // pred_check_branch
      %78 = sbr.rel (0) target = $region45
    $region44: #{tpu_custom_call.1} parent=1 // pred_region
      %79 = dma.done [#allocation9], 1024
    $region45: #{tpu_custom_call.1} parent=1 // pred_fallthru
      _
    %v81 = vld [vmem:[#allocation2] sm:$0xf]
    %v82 = vunpack.c.l.bf16 %v81
    %v83 = vmax.f32 %v82, 0.0
    %v84 = vpack.c.bf16 %v83, %v83
    %v85 = vld [vmem:[#allocation5] sm:$0xf]
    %v86 = vld [vmem:[#allocation5 + $0x4] sm:$0xf]
    %v87 = vld [vmem:[#allocation5 + $0x8] sm:$0xf]
    %v88 = vld [vmem:[#allocation5 + $0xc] sm:$0xf]
    %v89 = vld [vmem:[#allocation5 + $0x10] sm:$0xf]
    %v90 = vld [vmem:[#allocation5 + $0x14] sm:$0xf]
    %v91 = vld [vmem:[#allocation5 + $0x18] sm:$0xf]
    %v92 = vld [vmem:[#allocation5 + $0x1c] sm:$0xf]
    %v93 = vld [vmem:[#allocation5 + $0x20] sm:$0xf]
    %v94 = vld [vmem:[#allocation5 + $0x24] sm:$0xf]
    %v95 = vld [vmem:[#allocation5 + $0x28] sm:$0xf]
    %v96 = vld [vmem:[#allocation5 + $0x2c] sm:$0xf]
    %v97 = vld [vmem:[#allocation5 + $0x30] sm:$0xf]
    %v98 = vld [vmem:[#allocation5 + $0x34] sm:$0xf]
    %v99 = vld [vmem:[#allocation5 + $0x38] sm:$0xf]
    %v100 = vld [vmem:[#allocation5 + $0x3c] sm:$0xf]
    %v101 = vld [vmem:[%s2] sm:$0x1]
    %v103 = vlaneseq
    %v104 = vshrl.u32 %v103, 7
    %v105 = vsub.s32 0, %v104
    %v106 = vrot.slane %v101, %v105
    %v124 = vunpack.c.l.b16 %v85
    %v125 = vunpack.c.l.b16 %v86
    %v126 = vunpack.c.l.b16 %v87
    %v127 = vunpack.c.l.b16 %v88
    %v128 = vunpack.c.l.b16 %v89
    %v129 = vunpack.c.l.b16 %v90
    %v130 = vunpack.c.l.b16 %v91
    %v131 = vunpack.c.l.b16 %v92
    %v132 = vunpack.c.l.b16 %v93
    %v133 = vunpack.c.l.b16 %v94
    %v134 = vunpack.c.l.b16 %v95
    %v135 = vunpack.c.l.b16 %v96
    %v136 = vunpack.c.l.b16 %v97
    %v137 = vunpack.c.l.b16 %v98
    %v138 = vunpack.c.l.b16 %v99
    %v139 = vunpack.c.l.b16 %v100
    %v140 = vpack.c.b16 %v125, %v124
    %v141 = vpack.c.b16 %v127, %v126
    %v142 = vpack.c.b16 %v129, %v128
    %v143 = vpack.c.b16 %v131, %v130
    %v144 = vpack.c.b16 %v133, %v132
    %v145 = vpack.c.b16 %v135, %v134
    %v146 = vpack.c.b16 %v137, %v136
    %v147 = vpack.c.b16 %v139, %v138
    %156 = vmatprep.subr.bf16.mxu0 0
    %157 = vmatpush1.bf16.msra.mxu0 %v147
    %158 = vmatprep.subr.bf16.mxu0 0
    %159 = vmatpush1.bf16.msra.mxu0 %v146
    %160 = vmatprep.subr.bf16.mxu0 0
    %161 = vmatpush1.bf16.msra.mxu0 %v145
    %162 = vmatprep.subr.bf16.mxu0 0
    %163 = vmatpush1.bf16.msra.mxu0 %v144
    %164 = vmatprep.subr.bf16.mxu0 0
    %165 = vmatpush1.bf16.msra.mxu0 %v143
    %166 = vmatprep.subr.bf16.mxu0 0
    %167 = vmatpush1.bf16.msra.mxu0 %v142
    %168 = vmatprep.subr.bf16.mxu0 0
    %169 = vmatpush1.bf16.msra.mxu0 %v141
    %170 = vmatprep.subr.bf16.mxu0 0
    %171 = vmatpush1.bf16.msra.mxu0 %v140
    %172 = vmatprep.subr.bf16.mxu0 0
    %173 = vmatpush2.bf16.msra.mxu0 0
    %174 = vmatprep.subr.bf16.mxu0 0
    %175 = vmatpush2.bf16.msra.mxu0 0
    %176 = vmatprep.subr.bf16.mxu0 0
    %177 = vmatpush2.bf16.msra.mxu0 0
    %178 = vmatprep.subr.bf16.mxu0 0
    %179 = vmatpush2.bf16.msra.mxu0 0
    %180 = vmatprep.subr.bf16.mxu0 0
    %181 = vmatpush2.bf16.msra.mxu0 0
    %182 = vmatprep.subr.bf16.mxu0 0
    %183 = vmatpush2.bf16.msra.mxu0 0
    %184 = vmatprep.subr.bf16.mxu0 0
    %185 = vmatpush2.bf16.msra.mxu0 0
    %186 = vmatprep.subr.bf16.mxu0 0
    %187 = vmatpush2.bf16.msra.mxu0 0
    %188 = vmatprep.mubr.bf16.mxu0 0
    %189 = vmatmul.mubr.bf16.gmra.mxu0 %v84
    %v190 = vpop.f32.mrf.mxu0
    %v191 = vadd.f32 %v106, %v190
    %v192 = vpop.f32.mrf.mxu0
    %v193 = vpop.f32.mrf.mxu0
    %v194 = vpop.f32.mrf.mxu0
    %195 = vdwg.mxu0
    %v196 = vmax.f32 %v191, 0.0
    %v197 = vpack.c.bf16 %v196, %v196
    %v198 = vld [vmem:[#allocation7] sm:$0xf]
    %v199 = vld [vmem:[#allocation7 + $0x4] sm:$0xf]
    %v200 = vld [vmem:[#allocation7 + $0x8] sm:$0xf]
    %v201 = vld [vmem:[#allocation7 + $0xc] sm:$0xf]
    %v202 = vld [vmem:[#allocation7 + $0x10] sm:$0xf]
    %v203 = vld [vmem:[#allocation7 + $0x14] sm:$0xf]
    %v204 = vld [vmem:[#allocation7 + $0x18] sm:$0xf]
    %v205 = vld [vmem:[#allocation7 + $0x1c] sm:$0xf]
    %v206 = vld [vmem:[#allocation7 + $0x20] sm:$0xf]
    %v207 = vld [vmem:[#allocation7 + $0x24] sm:$0xf]
    %v208 = vld [vmem:[#allocation7 + $0x28] sm:$0xf]
    %v209 = vld [vmem:[#allocation7 + $0x2c] sm:$0xf]
    %v210 = vld [vmem:[#allocation7 + $0x30] sm:$0xf]
    %v211 = vld [vmem:[#allocation7 + $0x34] sm:$0xf]
    %v212 = vld [vmem:[#allocation7 + $0x38] sm:$0xf]
    %v213 = vld [vmem:[#allocation7 + $0x3c] sm:$0xf]
    %v214 = vld [vmem:[%s4] sm:$0x1]
    %v216 = vlaneseq
    %v217 = vshrl.u32 %v216, 7
    %v218 = vsub.s32 0, %v217
    %v219 = vrot.slane %v214, %v218
    %v237 = vunpack.c.l.b16 %v198
    %v238 = vunpack.c.l.b16 %v199
    %v239 = vunpack.c.l.b16 %v200
    %v240 = vunpack.c.l.b16 %v201
    %v241 = vunpack.c.l.b16 %v202
    %v242 = vunpack.c.l.b16 %v203
    %v243 = vunpack.c.l.b16 %v204
    %v244 = vunpack.c.l.b16 %v205
    %v245 = vunpack.c.l.b16 %v206
    %v246 = vunpack.c.l.b16 %v207
    %v247 = vunpack.c.l.b16 %v208
    %v248 = vunpack.c.l.b16 %v209
    %v249 = vunpack.c.l.b16 %v210
    %v250 = vunpack.c.l.b16 %v211
    %v251 = vunpack.c.l.b16 %v212
    %v252 = vunpack.c.l.b16 %v213
    %v253 = vpack.c.b16 %v238, %v237
    %v254 = vpack.c.b16 %v240, %v239
    %v255 = vpack.c.b16 %v242, %v241
    %v256 = vpack.c.b16 %v244, %v243
    %v257 = vpack.c.b16 %v246, %v245
    %v258 = vpack.c.b16 %v248, %v247
    %v259 = vpack.c.b16 %v250, %v249
    %v260 = vpack.c.b16 %v252, %v251
    %269 = vmatprep.subr.bf16.mxu0 0
    %270 = vmatpush1.bf16.msra.mxu0 %v260
    %271 = vmatprep.subr.bf16.mxu0 0
    %272 = vmatpush1.bf16.msra.mxu0 %v259
    %273 = vmatprep.subr.bf16.mxu0 0
    %274 = vmatpush1.bf16.msra.mxu0 %v258
    %275 = vmatprep.subr.bf16.mxu0 0
    %276 = vmatpush1.bf16.msra.mxu0 %v257
    %277 = vmatprep.subr.bf16.mxu0 0
    %278 = vmatpush1.bf16.msra.mxu0 %v256
    %279 = vmatprep.subr.bf16.mxu0 0
    %280 = vmatpush1.bf16.msra.mxu0 %v255
    %281 = vmatprep.subr.bf16.mxu0 0
    %282 = vmatpush1.bf16.msra.mxu0 %v254
    %283 = vmatprep.subr.bf16.mxu0 0
    %284 = vmatpush1.bf16.msra.mxu0 %v253
    %285 = vmatprep.subr.bf16.mxu0 0
    %286 = vmatpush2.bf16.msra.mxu0 0
    %287 = vmatprep.subr.bf16.mxu0 0
    %288 = vmatpush2.bf16.msra.mxu0 0
    %289 = vmatprep.subr.bf16.mxu0 0
    %290 = vmatpush2.bf16.msra.mxu0 0
    %291 = vmatprep.subr.bf16.mxu0 0
    %292 = vmatpush2.bf16.msra.mxu0 0
    %293 = vmatprep.subr.bf16.mxu0 0
    %294 = vmatpush2.bf16.msra.mxu0 0
    %295 = vmatprep.subr.bf16.mxu0 0
    %296 = vmatpush2.bf16.msra.mxu0 0
    %297 = vmatprep.subr.bf16.mxu0 0
    %298 = vmatpush2.bf16.msra.mxu0 0
    %299 = vmatprep.subr.bf16.mxu0 0
    %300 = vmatpush2.bf16.msra.mxu0 0
    %301 = vmatprep.mubr.bf16.mxu0 0
    %302 = vmatmul.mubr.bf16.gmra.mxu0 %v197
    %v303 = vpop.f32.mrf.mxu0
    %v304 = vadd.f32 %v219, %v303
    %v305 = vpop.f32.mrf.mxu0
    %v306 = vpop.f32.mrf.mxu0
    %v307 = vpop.f32.mrf.mxu0
    %308 = vdwg.mxu0
    %v309 = vmax.f32 %v304, 0.0
    %v310 = vpack.c.bf16 %v309, %v309
    %v311 = vld [vmem:[#allocation8] sm:$0xf]
    %v312 = vld [vmem:[#allocation8 + $0x4] sm:$0xf]
    %v313 = vld [vmem:[#allocation8 + $0x8] sm:$0xf]
    %v314 = vld [vmem:[#allocation8 + $0xc] sm:$0xf]
    %v315 = vld [vmem:[#allocation8 + $0x10] sm:$0xf]
    %v316 = vld [vmem:[#allocation8 + $0x14] sm:$0xf]
    %v317 = vld [vmem:[#allocation8 + $0x18] sm:$0xf]
    %v318 = vld [vmem:[#allocation8 + $0x1c] sm:$0xf]
    %v319 = vld [vmem:[#allocation8 + $0x20] sm:$0xf]
    %v320 = vld [vmem:[#allocation8 + $0x24] sm:$0xf]
    %v321 = vld [vmem:[#allocation8 + $0x28] sm:$0xf]
    %v322 = vld [vmem:[#allocation8 + $0x2c] sm:$0xf]
    %v323 = vld [vmem:[#allocation8 + $0x30] sm:$0xf]
    %v324 = vld [vmem:[#allocation8 + $0x34] sm:$0xf]
    %v325 = vld [vmem:[#allocation8 + $0x38] sm:$0xf]
    %v326 = vld [vmem:[#allocation8 + $0x3c] sm:$0xf]
    %v327 = vld [vmem:[%s6] sm:$0x1]
    %v329 = vlaneseq
    %v330 = vshrl.u32 %v329, 7
    %v331 = vsub.s32 0, %v330
    %v332 = vrot.slane %v327, %v331
    %v350 = vunpack.c.l.b16 %v311
    %v351 = vunpack.c.l.b16 %v312
    %v352 = vunpack.c.l.b16 %v313
    %v353 = vunpack.c.l.b16 %v314
    %v354 = vunpack.c.l.b16 %v315
    %v355 = vunpack.c.l.b16 %v316
    %v356 = vunpack.c.l.b16 %v317
    %v357 = vunpack.c.l.b16 %v318
    %v358 = vunpack.c.l.b16 %v319
    %v359 = vunpack.c.l.b16 %v320
    %v360 = vunpack.c.l.b16 %v321
    %v361 = vunpack.c.l.b16 %v322
    %v362 = vunpack.c.l.b16 %v323
    %v363 = vunpack.c.l.b16 %v324
    %v364 = vunpack.c.l.b16 %v325
    %v365 = vunpack.c.l.b16 %v326
    %v366 = vpack.c.b16 %v351, %v350
    %v367 = vpack.c.b16 %v353, %v352
    %v368 = vpack.c.b16 %v355, %v354
    %v369 = vpack.c.b16 %v357, %v356
    %v370 = vpack.c.b16 %v359, %v358
    %v371 = vpack.c.b16 %v361, %v360
    %v372 = vpack.c.b16 %v363, %v362
    %v373 = vpack.c.b16 %v365, %v364
    %382 = vmatprep.subr.bf16.mxu0 0
    %383 = vmatpush1.bf16.msra.mxu0 %v373
    %384 = vmatprep.subr.bf16.mxu0 0
    %385 = vmatpush1.bf16.msra.mxu0 %v372
    %386 = vmatprep.subr.bf16.mxu0 0
    %387 = vmatpush1.bf16.msra.mxu0 %v371
    %388 = vmatprep.subr.bf16.mxu0 0
    %389 = vmatpush1.bf16.msra.mxu0 %v370
    %390 = vmatprep.subr.bf16.mxu0 0
    %391 = vmatpush1.bf16.msra.mxu0 %v369
    %392 = vmatprep.subr.bf16.mxu0 0
    %393 = vmatpush1.bf16.msra.mxu0 %v368
    %394 = vmatprep.subr.bf16.mxu0 0
    %395 = vmatpush1.bf16.msra.mxu0 %v367
    %396 = vmatprep.subr.bf16.mxu0 0
    %397 = vmatpush1.bf16.msra.mxu0 %v366
    %398 = vmatprep.subr.bf16.mxu0 0
    %399 = vmatpush2.bf16.msra.mxu0 0
    %400 = vmatprep.subr.bf16.mxu0 0
    %401 = vmatpush2.bf16.msra.mxu0 0
    %402 = vmatprep.subr.bf16.mxu0 0
    %403 = vmatpush2.bf16.msra.mxu0 0
    %404 = vmatprep.subr.bf16.mxu0 0
    %405 = vmatpush2.bf16.msra.mxu0 0
    %406 = vmatprep.subr.bf16.mxu0 0
    %407 = vmatpush2.bf16.msra.mxu0 0
    %408 = vmatprep.subr.bf16.mxu0 0
    %409 = vmatpush2.bf16.msra.mxu0 0
    %410 = vmatprep.subr.bf16.mxu0 0
    %411 = vmatpush2.bf16.msra.mxu0 0
    %412 = vmatprep.subr.bf16.mxu0 0
    %413 = vmatpush2.bf16.msra.mxu0 0
    %414 = vmatprep.mubr.bf16.mxu0 0
    %415 = vmatmul.mubr.bf16.gmra.mxu0 %v310
    %v416 = vpop.f32.mrf.mxu0
    %v417 = vadd.f32 %v332, %v416
    %v418 = vpop.f32.mrf.mxu0
    %v419 = vpop.f32.mrf.mxu0
    %v420 = vpop.f32.mrf.mxu0
    %421 = vdwg.mxu0
    %vm422 = vcmp.gt.f32.partialorder %v417, 0.0
    %v423 = vsel %vm422, 1, 0
    %v424 = vcvt.s32.f32 %v423
    %425 = vst [vmem:[#allocation10] sm:$0xff] %v424
    // Predicated region
    $region46: #{tpu_custom_call.1} parent=1 // pred_check
      _
    $region47: #{tpu_custom_call.1} parent=1 // pred_check_branch
      %427 = sbr.rel (0) target = $region49
    $region48: #{tpu_custom_call.1} parent=1 // pred_region
      %s429 = ssub.s32 128, 128
      %430 = vsyncadd [#allocation4], %s429
      %s432 = sshll.u32 [#allocation10], 4
      %s433 = int_to_ptr.vmem [resolvable:$true] %s432
      %435 = dma.vmem_to_hbm [thread:$0]  %s433, 128, %s7, [#allocation4]
    $region49: #{tpu_custom_call.1} parent=1 // pred_fallthru
      _
    // Predicated region
    $region50: #{tpu_custom_call.1} parent=1 // pred_check
      _
    $region51: #{tpu_custom_call.1} parent=1 // pred_check_branch
      %437 = sbr.rel (0) target = $region53
    $region52: #{tpu_custom_call.1} parent=1 // pred_region
      %438 = dma.done [#allocation4], 128
    $region53: #{tpu_custom_call.1} parent=1 // pred_fallthru
      _
    %439 = vsyncpa [#allocation3], 1
    %440 = vsyncpa [#allocation6], 1
    %441 = vsyncpa [#allocation9], 1
    %442 = vsyncpa [#allocation4], 1

</llo_original>
